<compile_context>
chip_gen: v6e
topology: v6e:2x2x1
jax: 0.10.0
libtpu: 0.0.40
codegen_flags: <defaults>
</compile_context>

<pallas_src>
import jax
import jax.numpy as jnp
from jax.experimental import pallas as pl
from jax.experimental.pallas import tpu as pltpu


LANES = 128
TARGET_BLOCK_BYTES = 4 * 1024 * 1024   # per input, per pipeline buffer
NUM_CORES = 2                          # v7x TensorCores; no-op on v5e/v6e


def _make_kernel(steps: int, grid_len: int, acc_rows: int,
                 needs_mask: bool, tail_valid: int, has_extra: bool):
    last_blk = grid_len - 1

    def bce(x, y):
        # Numerically stable BCE-with-logits (same formula PyTorch uses).
        # TODO(synk): on v7x, if the bundle dump shows EUP as the binding slot
        # after the 2-TC split, evaluate exp(-|x|) in bf16; keep f32 elsewhere.
        return jnp.maximum(x, 0.0) - x * y + jnp.log1p(jnp.exp(-jnp.abs(x)))

    def kernel(x_ref, y_ref, out_ref):
        c = pl.program_id(0)          # core index (parallel axis)
        i = pl.program_id(1)          # step within this core's block range
        blk = c * steps + i           # global block index

        @pl.when(i == 0)
        def _init():
            out_ref[...] = jnp.zeros_like(out_ref)

        def accumulate(mask_tail: bool):
            x = x_ref[...].astype(jnp.float32)
            y = y_ref[...].astype(jnp.float32)
            loss = bce(x, y)
            if mask_tail:
                # Mask the ragged tail (pad zeros / OOB garbage). Offsets are
                # local to this block, so int32 is always safe. Select-based
                # masking so NaN/Inf garbage cannot leak into the sum.
                r = jax.lax.broadcasted_iota(jnp.int32, loss.shape, 0)
                col = jax.lax.broadcasted_iota(jnp.int32, loss.shape, 1)
                loss = jnp.where(r * LANES + col < tail_valid, loss, 0.0)
            # (block_rows,128) -> (block_rows/acc_rows, acc_rows, 128) -> sum:
            # pure VPU adds into acc_rows independent accumulation chains.
            out_ref[...] += loss.reshape(-1, acc_rows, LANES).sum(axis=0)

        if needs_mask:
            @pl.when(blk < last_blk)
            def _main():
                accumulate(False)

            @pl.when(blk == last_blk)
            def _tail():
                accumulate(True)
            # blk > last_blk (clamped extra step): contributes nothing.
        elif has_extra:
            @pl.when(blk <= last_blk)
            def _main():
                accumulate(False)
        else:
            accumulate(False)

    return kernel


def boundary_map_loss(inp: jax.Array, edge: jax.Array, *,
                      tile_rows: int | None = None) -> jax.Array:
    assert inp.shape == edge.shape
    n_valid = int(inp.size)
    assert n_valid > 0

    x_flat = inp.reshape(-1)
    y_flat = edge.reshape(-1)

    item_x = jnp.dtype(inp.dtype).itemsize
    item_y = jnp.dtype(edge.dtype).itemsize
    # Sublane alignment for the narrower dtype (f32: 8, bf16: 16, int8: 32).
    sub_req = max(8, 32 // item_x, 32 // item_y)
    chunk = sub_req * LANES

    # TODO(synk): the rare unaligned fallback still materializes jnp.pad (one
    # extra HBM pass); could instead run the kernel on the aligned prefix and
    # fold the < chunk remainder with a tiny pure-JAX sum.
    padded = -(-n_valid // chunk) * chunk
    if padded != n_valid:
        x_flat = jnp.pad(x_flat, (0, padded - n_valid))
        y_flat = jnp.pad(y_flat, (0, padded - n_valid))

    rows = padded // LANES
    x2d = x_flat.reshape(rows, LANES)
    y2d = y_flat.reshape(rows, LANES)

    if tile_rows is None:
        # ~4 MiB per input per buffer: 8192 rows f32, 16384 rows bf16.
        tile_rows = TARGET_BLOCK_BYTES // (LANES * max(item_x, item_y))
    tile_rows = max(sub_req, (tile_rows // sub_req) * sub_req)

    block_rows = min(tile_rows, rows)
    grid_len = -(-rows // block_rows)                 # total number of blocks

    num_cores = NUM_CORES if grid_len >= NUM_CORES else 1
    steps = -(-grid_len // num_cores)                 # blocks per core
    has_extra = num_cores * steps != grid_len         # core 1 has a dead step

    needs_mask = grid_len * block_rows * LANES != n_valid
    tail_valid = int(n_valid - (grid_len - 1) * block_rows * LANES)

    # Widest power-of-two accumulator (<=64 rows) that divides block_rows.
    acc_rows = 64
    while block_rows % acc_rows:
        acc_rows //= 2

    if has_extra:
        def in_map(c, i):
            # Clamp the dead extra step of the last core onto an existing
            # block (no new DMA is issued; the kernel skips it).
            return (jnp.minimum(c * steps + i, grid_len - 1), 0)
    else:
        def in_map(c, i):
            return (c * steps + i, 0)

    cost = pl.CostEstimate(
        flops=6 * n_valid,
        transcendentals=2 * n_valid,
        bytes_accessed=(item_x + item_y) * n_valid
                       + 4 * num_cores * acc_rows * LANES,
    )

    partials = pl.pallas_call(
        _make_kernel(steps, grid_len, acc_rows, needs_mask, tail_valid,
                     has_extra),
        out_shape=jax.ShapeDtypeStruct((num_cores * acc_rows, LANES),
                                       jnp.float32),
        grid_spec=pltpu.PrefetchScalarGridSpec(
            num_scalar_prefetch=0,
            grid=(num_cores, steps),
            in_specs=[
                pl.BlockSpec((block_rows, LANES), in_map),
                pl.BlockSpec((block_rows, LANES), in_map),
            ],
            out_specs=pl.BlockSpec((acc_rows, LANES), lambda c, i: (c, 0)),
        ),
        compiler_params=pltpu.CompilerParams(
            dimension_semantics=("parallel", "arbitrary"),
            vmem_limit_bytes=32 * 1024 * 1024,
        ),
        cost_estimate=cost,
    )(x2d, y2d)

    # Per-core partial sums -> mean (tiny XLA reduce over <= 16K f32).
    return jnp.sum(partials) * (1.0 / float(n_valid))


def _reference(inp, edge):
    x = inp.astype(jnp.float32)
    y = edge.astype(jnp.float32)
    loss = jnp.maximum(x, 0.0) - x * y + jnp.log1p(jnp.exp(-jnp.abs(x)))
    return jnp.mean(loss)


if __name__ == "__main__":
    key = jax.random.PRNGKey(0)
    ks = jax.random.split(key, 8)

    def check(logits, edge, tile_rows=None, atol=1e-5, rtol=1e-5):
        loss = boundary_map_loss(logits, edge, tile_rows=tile_rows)
        jax.block_until_ready(loss)
        ref = _reference(logits, edge)
        assert jnp.allclose(loss, ref, atol=atol, rtol=rtol), (loss, ref)

    # Case 1: aligned NCHW shape (single block, no pad, no mask).
    shape = (2, 4, 16, 16)
    logits = jax.random.normal(ks[0], shape, dtype=jnp.float32)
    edge = (jax.random.uniform(ks[1], shape) > 0.5).astype(jnp.float32)
    check(logits, edge)

    # Case 2: unaligned shape, single block (pad + tail-mask path).
    shape2 = (2, 3, 15, 17)
    logits2 = jax.random.normal(ks[2], shape2, dtype=jnp.float32)
    edge2 = (jax.random.uniform(ks[3], shape2) > 0.5).astype(jnp.float32)
    check(logits2, edge2)

    # Case 2b: same data, small tile override -> 2 blocks, ragged tail block
    # owned by core 1 of the parallel split.
    check(logits2, edge2, tile_rows=8)

    # Case 3: odd number of blocks -> exercises the clamped extra step on the
    # second core (3 blocks of 8 rows, no masking needed).
    shape3 = (2, 4, 24, 16)
    logits3 = jax.random.normal(ks[4], shape3, dtype=jnp.float32)
    edge3 = (jax.random.uniform(ks[5], shape3) > 0.5).astype(jnp.float32)
    check(logits3, edge3, tile_rows=8)

    # Case 4: bf16 inputs streamed natively (upcast to f32 inside the kernel).
    logits4 = jax.random.normal(ks[6], shape, dtype=jnp.float32).astype(jnp.bfloat16)
    edge4 = (jax.random.uniform(ks[7], shape) > 0.5).astype(jnp.bfloat16)
    check(logits4, edge4, atol=1e-5, rtol=1e-5)

    print("KERNEL_OK")
</pallas_src>

<mosaic_0001>
module attributes {stable_mosaic.version = 11 : i64} {
  func.func @kernel(%arg0: i32, %arg1: i32, %arg2: memref<16x128xf32, #tpu.memory_space<vmem>>, %arg3: memref<16x128xf32, #tpu.memory_space<vmem>>, %arg4: memref<16x128xf32, #tpu.memory_space<vmem>>) attributes {dimension_semantics = [#tpu.dimension_semantics<parallel>, #tpu.dimension_semantics<arbitrary>], iteration_bounds = array<i64: 1, 1>, scalar_prefetch = 0 : i64, scratch_operands = 0 : i64, tpu.core_type = #tpu.core_type<tc>, window_params = [{transform_indices = @transform_0, window_bounds = array<i64: 16, 128>}, {transform_indices = @transform_1, window_bounds = array<i64: 16, 128>}, {transform_indices = @transform_2, window_bounds = array<i64: 16, 128>}]} {
    %c0_i32 = arith.constant 0 : i32
    %0 = arith.cmpi eq, %arg1, %c0_i32 : i32
    %1 = arith.extui %0 : i1 to i32
    %c0_i32_0 = arith.constant 0 : i32
    %2 = arith.cmpi ne, %1, %c0_i32_0 : i32
    scf.if %2 {
      %cst_10 = arith.constant 0.000000e+00 : f32
      %20 = vector.broadcast %cst_10 : f32 to vector<16x128xf32>
      %c0_11 = arith.constant 0 : index
      %c0_12 = arith.constant 0 : index
      %21 = vector.load %arg4[%c0_11, %c0_12] : memref<16x128xf32, #tpu.memory_space<vmem>>, vector<16x128xf32>
      tpu.vector_store %arg4[%c0_11, %c0_12], %20 {strides = array<i32>} : memref<16x128xf32, #tpu.memory_space<vmem>>, vector<16x128xf32>,
    } else {
    }
    %c0 = arith.constant 0 : index
    %c0_1 = arith.constant 0 : index
    %3 = vector.load %arg2[%c0, %c0_1] : memref<16x128xf32, #tpu.memory_space<vmem>>, vector<16x128xf32>
    %c0_2 = arith.constant 0 : index
    %c0_3 = arith.constant 0 : index
    %4 = vector.load %arg3[%c0_2, %c0_3] : memref<16x128xf32, #tpu.memory_space<vmem>>, vector<16x128xf32>
    %cst = arith.constant 0.000000e+00 : f32
    %5 = vector.broadcast %cst : f32 to vector<16x128xf32>
    %6 = arith.maximumf %3, %5 : vector<16x128xf32>
    %7 = arith.mulf %3, %4 : vector<16x128xf32>
    %8 = arith.subf %6, %7 : vector<16x128xf32>
    %9 = math.absf %3 : vector<16x128xf32>
    %cst_4 = arith.constant 0.000000e+00 : f32
    %10 = vector.broadcast %cst_4 : f32 to vector<16x128xf32>
    %11 = arith.subf %10, %9 : vector<16x128xf32>
    %12 = math.exp %11 : vector<16x128xf32>
    %13 = math.log1p %12 : vector<16x128xf32>
    %14 = arith.addf %8, %13 : vector<16x128xf32>
    %c0_5 = arith.constant 0 : index
    %c0_6 = arith.constant 0 : index
    %15 = vector.load %arg4[%c0_5, %c0_6] : memref<16x128xf32, #tpu.memory_space<vmem>>, vector<16x128xf32>
    %16 = vector.shape_cast %14 : vector<16x128xf32> to vector<1x16x128xf32>
    %cst_7 = arith.constant dense<0.000000e+00> : vector<16x128xf32>
    %17 = vector.multi_reduction <add>, %16, %cst_7 [0] : vector<1x16x128xf32> to vector<16x128xf32>
    %18 = arith.addf %15, %17 : vector<16x128xf32>
    %c0_8 = arith.constant 0 : index
    %c0_9 = arith.constant 0 : index
    %19 = vector.load %arg4[%c0_8, %c0_9] : memref<16x128xf32, #tpu.memory_space<vmem>>, vector<16x128xf32>
    tpu.vector_store %arg4[%c0_8, %c0_9], %18 {strides = array<i32>} : memref<16x128xf32, #tpu.memory_space<vmem>>, vector<16x128xf32>,
    return
  }
  func.func @transform_0(%arg0: i32, %arg1: i32) -> (i32, i32) {
    %c1_i32 = arith.constant 1 : i32
    %0 = arith.muli %arg0, %c1_i32 : i32
    %1 = arith.addi %0, %arg1 : i32
    %c0_i32 = arith.constant 0 : i32
    %c0_i32_0 = arith.constant 0 : i32
    return %1, %c0_i32 : i32, i32
  }
  func.func @transform_1(%arg0: i32, %arg1: i32) -> (i32, i32) {
    %c1_i32 = arith.constant 1 : i32
    %0 = arith.muli %arg0, %c1_i32 : i32
    %1 = arith.addi %0, %arg1 : i32
    %c0_i32 = arith.constant 0 : i32
    %c0_i32_0 = arith.constant 0 : i32
    return %1, %c0_i32 : i32, i32
  }
  func.func @transform_2(%arg0: i32, %arg1: i32) -> (i32, i32) {
    %c0_i32 = arith.constant 0 : i32
    %c0_i32_0 = arith.constant 0 : i32
    return %arg0, %c0_i32 : i32, i32
  }
}

</mosaic_0001>

<llo_original>
// kernel: tpu_custom_call.1
$region0: #{tpu_custom_call.1}
  #allocation0 [shape = 'u32[]', space=smem, size = 0x4, offset = 0x4, fixed_abs, tag = 'smem constant byte address 0x4 - core index']
  #allocation1 [shape = 'u32[144,128]{1,0:T(1,128)}', space=vmem, size = 0x12000, scoped, tag = 'internal scratch']
  %s0 = inlined_call_operand.hbm [shape: f32[16,128], index: 0, kind: input, shape index: {}]
  %s1 = inlined_call_operand.hbm [shape: f32[16,128], index: 1, kind: input, shape index: {}]
  %s2 = inlined_call_operand.hbm [shape: f32[16,128], index: 2, kind: output, shape index: {}]
  %s3 = sld [smem:[#allocation0]]
  $region30: #{tpu_custom_call.1} parent=0
    _
  %s5 = ssub.s32 1, %s3
  %s6 = scalar_select 0, %s5, %s3
  $region1: #{tpu_custom_call.1} parent=0
    #allocation2 [shape = 'u8[8192]{0}', space=vmem, size = 0x2000, scoped, tag = 'input window, operand 0, single buffered']
    #allocation3 [shape = 's32[1]{0}', space=sflag, size = 0x4, scoped, tag = 'scoped memory for tpu_custom_call.1']
    #allocation4 [shape = 's32[1]{0}', space=sflag, size = 0x4, scoped, tag = 'scoped memory for tpu_custom_call.1']
    #allocation5 [shape = 'u8[8192]{0}', space=vmem, size = 0x2000, scoped, tag = 'input window, operand 1, single buffered']
    #allocation6 [shape = 's32[1]{0}', space=sflag, size = 0x4, scoped, tag = 'scoped memory for tpu_custom_call.1']
    #allocation7 [shape = 'u8[8192]{0}', space=vmem, size = 0x2000, scoped, tag = 'output window, operand 0, single buffered']
    %7 = vsyncpa [#allocation3], 0
    %8 = vsyncpa [#allocation6], 0
    %9 = vsyncpa [#allocation4], 0
    // Predicated region
    $region2: #{tpu_custom_call.1} parent=1 // pred_check
      _
    $region3: #{tpu_custom_call.1} parent=1 // pred_check_branch
      %11 = sbr.rel (0) target = $region5
    $region4: #{tpu_custom_call.1} parent=1 // pred_region
      %s12 = sadd.s32 0, 0
      %s13 = smul.u32 2, %s12
      %s15 = ssub.s32 256, 256
      %16 = vsyncadd [#allocation3], %s15
      %s17 = smul.addr %s13, 128
      %s18 = scalar_lea.hbm %s0, %s17
      %s19 = sshll.u32 [#allocation2], 4
      %s20 = int_to_ptr.vmem [resolvable:$true] %s19
      %25 = dma.hbm_to_vmem [thread:$0]  %s18, 256, %s20, [#allocation3], 128, 128, 8
    $region5: #{tpu_custom_call.1} parent=1 // pred_fallthru
      _
    // Predicated region
    $region6: #{tpu_custom_call.1} parent=1 // pred_check
      _
    $region7: #{tpu_custom_call.1} parent=1 // pred_check_branch
      %27 = sbr.rel (0) target = $region9
    $region8: #{tpu_custom_call.1} parent=1 // pred_region
      %s28 = sadd.s32 0, 0
      %s29 = smul.u32 2, %s28
      %s31 = ssub.s32 256, 256
      %32 = vsyncadd [#allocation6], %s31
      %s33 = smul.addr %s29, 128
      %s34 = scalar_lea.hbm %s1, %s33
      %s35 = sshll.u32 [#allocation5], 4
      %s36 = int_to_ptr.vmem [resolvable:$true] %s35
      %41 = dma.hbm_to_vmem [thread:$0]  %s34, 256, %s36, [#allocation6], 128, 128, 8
    $region9: #{tpu_custom_call.1} parent=1 // pred_fallthru
      _
    // Predicated region
    $region10: #{tpu_custom_call.1} parent=1 // pred_check
      _
    $region11: #{tpu_custom_call.1} parent=1 // pred_check_branch
      %43 = sbr.rel (0) target = $region13
    $region12: #{tpu_custom_call.1} parent=1 // pred_region
      %44 = dma.done [#allocation3], 256
    $region13: #{tpu_custom_call.1} parent=1 // pred_fallthru
      _
    // Predicated region
    $region14: #{tpu_custom_call.1} parent=1 // pred_check
      _
    $region15: #{tpu_custom_call.1} parent=1 // pred_check_branch
      %46 = sbr.rel (0) target = $region17
    $region16: #{tpu_custom_call.1} parent=1 // pred_region
      %47 = dma.done [#allocation6], 256
    $region17: #{tpu_custom_call.1} parent=1 // pred_fallthru
      _
    %s48 = sadd.s32 0, 0
    %s49 = smul.u32 2, %s48
    %s50 = sadd.s32 0, 0
    %s51 = smul.u32 2, %s50
    %p52 = scmp.eq.s32.totalorder 0, 0
    // Predicated region
    $region18: #{tpu_custom_call.1} parent=1 // pred_check
      %p53 = pneg %p52
    $region19: #{tpu_custom_call.1} parent=1 // pred_check_branch
      %55 = sbr.rel (%p53) target = $region21
    $region20: #{tpu_custom_call.1} parent=1 // pred_region
      %56 = vst [vmem:[#allocation7] sm:$0xff] 0.0
      %57 = vst [vmem:[#allocation7 + $0x8] sm:$0xff] 0.0
    $region21: #{tpu_custom_call.1} parent=1 // pred_fallthru
      _
    %v58 = vld [vmem:[#allocation2] sm:$0xff]
    %v59 = vld [vmem:[#allocation2 + $0x8] sm:$0xff]
    %v60 = vld [vmem:[#allocation5] sm:$0xff]
    %v61 = vld [vmem:[#allocation5 + $0x8] sm:$0xff]
    %v62 = vmax.f32 %v58, 0.0
    %v63 = vmax.f32 %v59, 0.0
    %v64 = vmul.f32 %v58, %v60
    %v65 = vmul.f32 %v59, %v61
    %v66 = vsub.f32 %v62, %v64
    %v67 = vsub.f32 %v63, %v65
    %v68 = vand.u32 2147483647, %v58
    %v69 = vand.u32 2147483647, %v59
    %v70 = vsub.f32 0.0, %v68
    %v71 = vsub.f32 0.0, %v69
    %v72 = vmul.f32 %v70, 1.442695
    %v73 = vpow.pop %v72
    %v74 = vmul.f32 %v71, 1.442695
    %v75 = vpow.pop %v74
    %v76 = vadd.f32 %v73, 1.0
    %v77 = vlog2.pop %v76
    %v78 = vmul.f32 %v77, 0.6931472
    %v79 = vmul.f32 -0.5, %v73
    %v80 = vadd.f32 %v79, 1.0
    %v81 = vmul.f32 %v80, %v73
    %v82 = vand.u32 2147483647, %v73
    %vm83 = vcmp.lt.f32.partialorder %v82, 0.0004427343
    %v84 = vsel %vm83, %v81, %v78
    %v85 = vadd.f32 %v75, 1.0
    %v86 = vlog2.pop %v85
    %v87 = vmul.f32 %v86, 0.6931472
    %v88 = vmul.f32 -0.5, %v75
    %v89 = vadd.f32 %v88, 1.0
    %v90 = vmul.f32 %v89, %v75
    %v91 = vand.u32 2147483647, %v75
    %vm92 = vcmp.lt.f32.partialorder %v91, 0.0004427343
    %v93 = vsel %vm92, %v90, %v87
    %v94 = vadd.f32 %v66, %v84
    %v95 = vadd.f32 %v67, %v93
    %v96 = vld [vmem:[#allocation7] sm:$0xff]
    %v97 = vld [vmem:[#allocation7 + $0x8] sm:$0xff]
    %v98 = vadd.f32 %v94, 0.0
    %v99 = vadd.f32 %v95, 0.0
    %v100 = vadd.f32 %v96, %v98
    %v101 = vadd.f32 %v97, %v99
    %102 = vst [vmem:[#allocation7] sm:$0xff] %v100
    %103 = vst [vmem:[#allocation7 + $0x8] sm:$0xff] %v101
    // Predicated region
    $region22: #{tpu_custom_call.1} parent=1 // pred_check
      _
    $region23: #{tpu_custom_call.1} parent=1 // pred_check_branch
      %105 = sbr.rel (0) target = $region25
    $region24: #{tpu_custom_call.1} parent=1 // pred_region
      %s107 = ssub.s32 256, 256
      %108 = vsyncadd [#allocation4], %s107
      %s109 = sshll.u32 [#allocation7], 4
      %s110 = int_to_ptr.vmem [resolvable:$true] %s109
      %115 = dma.vmem_to_hbm [thread:$0]  %s110, 256, %s2, [#allocation4], 128, 128, 8
    $region25: #{tpu_custom_call.1} parent=1 // pred_fallthru
      _
    // Predicated region
    $region26: #{tpu_custom_call.1} parent=1 // pred_check
      _
    $region27: #{tpu_custom_call.1} parent=1 // pred_check_branch
      %117 = sbr.rel (0) target = $region29
    $region28: #{tpu_custom_call.1} parent=1 // pred_region
      %118 = dma.done [#allocation4], 256
    $region29: #{tpu_custom_call.1} parent=1 // pred_fallthru
      _
    %119 = vsyncpa [#allocation3], 1
    %120 = vsyncpa [#allocation6], 1
    %121 = vsyncpa [#allocation4], 1

</llo_original>
